<compile_context>
chip_gen: v7x
topology: tpu7x:2x2x1
jax: 0.10.0
libtpu: 0.0.40
codegen_flags: <defaults>
</compile_context>

<pallas_src>
import functools

import jax
import jax.numpy as jnp
from jax.experimental import pallas as pl
from jax.experimental.pallas import tpu as pltpu


HEAD_NAMES = ("gender", "hand", "year", "level")


def _round_up(n, m):
    return ((n + m - 1) // m) * m


def _lane_pad(n):
    return _round_up(max(n, 1), 128)


def _mlp_kernel(x_ref, ws_ref, bs_ref, w1_ref, b1_ref, w2_ref, b2_ref, out_ref):
    # x / weights arrive as bf16 (halved HBM traffic); all accumulation is f32.
    x = x_ref[...]

    # shared_fc -> ReLU -> (dropout = identity in eval mode).
    h = jnp.dot(x, ws_ref[...], preferred_element_type=jnp.float32) + bs_ref[...]
    h = jnp.maximum(h, 0.0)
    # TODO(synk): training-mode dropout (pltpu.prng_* + mask) intentionally omitted;
    # forward matches nn.Dropout in eval mode (identity).

    # All four head first-layers fused into one lane-dense matmul.
    z = jnp.dot(h.astype(jnp.bfloat16), w1_ref[...],
                preferred_element_type=jnp.float32) + b1_ref[...]
    z = jnp.maximum(z, 0.0)

    # All four head second-layers fused into one block-diagonal matmul whose output
    # width equals the true number of logits -> minimal HBM writeback.
    out_ref[...] = (
        jnp.dot(z.astype(jnp.bfloat16), w2_ref[...],
                preferred_element_type=jnp.float32) + b2_ref[...]
    ).astype(out_ref.dtype)


def init_params(key, input_dim, num_classes=(1, 1, 3, 4), hidden_dim=32):
    """Deterministic PyTorch-Linear-style init: U(-1/sqrt(fan_in), 1/sqrt(fan_in))."""
    shared_out = input_dim // 2

    def linear(k, fan_in, fan_out):
        kw, kb = jax.random.split(k)
        bound = 1.0 / jnp.sqrt(jnp.float32(fan_in))
        w = jax.random.uniform(kw, (fan_in, fan_out), jnp.float32, -bound, bound)
        b = jax.random.uniform(kb, (1, fan_out), jnp.float32, -bound, bound)
        return w, b

    keys = jax.random.split(key, 9)
    params = {"shared": linear(keys[0], input_dim, shared_out)}
    for i, name in enumerate(HEAD_NAMES):
        l1 = linear(keys[1 + 2 * i], shared_out, hidden_dim)
        l2 = linear(keys[2 + 2 * i], hidden_dim, num_classes[i])
        params[name] = (l1, l2)
    return params


def pack_params(params, num_classes=(1, 1, 3, 4)):
    """Fuse the 4 heads into lane-dense weights (done ONCE). Weights -> bf16, biases f32."""
    ws, bs = params["shared"]
    heads = [params[n] for n in HEAD_NAMES]
    hidden_dim = heads[0][0][0].shape[1]

    # Fused head layer 1: (shared_out, 4*H), (1, 4*H).
    w1 = jnp.concatenate([h[0][0] for h in heads], axis=1)
    b1 = jnp.concatenate([h[0][1] for h in heads], axis=1)

    # Fused head layer 2: block-diagonal (4*H, total) — NO 128-lane output padding.
    total = sum(num_classes)
    w2 = jnp.zeros((4 * hidden_dim, total), jnp.float32)
    b2 = jnp.zeros((1, total), jnp.float32)
    off = 0
    for i, h in enumerate(heads):
        w2i, b2i = h[1]
        nc = w2i.shape[1]
        w2 = w2.at[i * hidden_dim:(i + 1) * hidden_dim, off:off + nc].set(w2i)
        b2 = b2.at[:, off:off + nc].set(b2i)
        off += nc

    return {
        "ws": ws.astype(jnp.bfloat16), "bs": bs.astype(jnp.float32),
        "w1": w1.astype(jnp.bfloat16), "b1": b1.astype(jnp.float32),
        "w2": w2.astype(jnp.bfloat16), "b2": b2.astype(jnp.float32),
    }


@functools.partial(jax.jit, static_argnames=("num_classes", "tile_b"))
def mlp_forward(x, packed, num_classes=(1, 1, 3, 4), tile_b=1024):
    B, D = x.shape
    S = packed["ws"].shape[1]
    H4 = packed["w1"].shape[1]
    total = packed["w2"].shape[1]

    # bf16 input stream halves the dominant per-row HBM bytes; math stays f32 in-kernel.
    x = x.astype(jnp.bfloat16)

    # ---- batch-tile selection (no jnp.pad: Pallas clips the ragged last block) ----
    if B <= 8:
        tb = B                                  # single block == full batch dim (legal)
    else:
        tb = min(_round_up(tile_b, 8), _round_up(B, 8))
        # Guarantee >=2 grid steps when the batch allows it so both v7x TensorCores
        # get work from the "parallel" batch axis (measured neutral on 1-TC v5e/v6e).
        if pl.cdiv(B, tb) < 2:
            tb = _round_up(pl.cdiv(_round_up(B, 8), 2), 8)
    grid = (pl.cdiv(B, tb),)

    cost = pl.CostEstimate(
        flops=2 * B * (D * S + S * H4 + H4 * total),
        transcendentals=0,
        bytes_accessed=(B * D * 2 + B * total * 4
                        + (D * S + S * H4 + H4 * total) * 2
                        + (S + H4 + total) * 4),
    )

    # Rough VMEM need; only raise the scoped limit when large tiles actually require it.
    vmem_est = (
        2 * tb * _lane_pad(D) * 2                      # double-buffered x tile (bf16)
        + 2 * tb * _lane_pad(total) * 4                # double-buffered out tile (f32)
        + tb * (_lane_pad(S) + _lane_pad(H4)) * 4      # h / z intermediates (f32)
        + (_lane_pad(S) * (D + 1) + _lane_pad(H4) * (S + 1)
           + _lane_pad(total) * (H4 + 1)) * 4          # resident weights/biases (upper bound)
    )
    vmem_limit = int(min(100 << 20, 2 * vmem_est)) if vmem_est > (12 << 20) else None

    out = pl.pallas_call(
        _mlp_kernel,
        out_shape=jax.ShapeDtypeStruct((B, total), jnp.float32),
        grid=grid,
        in_specs=[
            pl.BlockSpec((tb, D), lambda i: (i, 0)),          # x: tiled over batch
            pl.BlockSpec((D, S), lambda i: (0, 0)),           # weights stay VMEM-resident
            pl.BlockSpec((1, S), lambda i: (0, 0)),
            pl.BlockSpec((S, H4), lambda i: (0, 0)),
            pl.BlockSpec((1, H4), lambda i: (0, 0)),
            pl.BlockSpec((H4, total), lambda i: (0, 0)),
            pl.BlockSpec((1, total), lambda i: (0, 0)),
        ],
        out_specs=pl.BlockSpec((tb, total), lambda i: (i, 0)),  # narrow (9-wide) slab
        compiler_params=pltpu.CompilerParams(
            dimension_semantics=("parallel",),
            vmem_limit_bytes=vmem_limit,
        ),
        cost_estimate=cost,
    )(x, packed["ws"], packed["bs"], packed["w1"], packed["b1"],
      packed["w2"], packed["b2"])

    # Slice per-head logits once from the narrow (B, total) result.
    results = []
    off = 0
    for nc in num_classes:
        results.append(out[:, off:off + nc])
        off += nc
    return tuple(results)


def reference_forward(x, params):
    """Pure-JAX f32 reference (unfused) for correctness checking."""
    ws, bs = params["shared"]
    h = jnp.maximum(x @ ws + bs, 0.0)
    outs = []
    for name in HEAD_NAMES:
        (w1, b1), (w2, b2) = params[name]
        z = jnp.maximum(h @ w1 + b1, 0.0)
        outs.append(z @ w2 + b2)
    return tuple(outs)


if __name__ == "__main__":
    batch = 8
    input_dim = 64
    hidden_dim = 32
    num_classes = (1, 1, 3, 4)

    key = jax.random.PRNGKey(0)
    kx, kp = jax.random.split(key)
    x = jax.random.normal(kx, (batch, input_dim), jnp.float32)
    params = init_params(kp, input_dim, num_classes, hidden_dim)
    packed = pack_params(params, num_classes)

    outs = mlp_forward(x, packed, num_classes=num_classes)
    outs = jax.block_until_ready(outs)

    refs = reference_forward(x, params)
    for o, r in zip(outs, refs):
        assert o.shape == r.shape, (o.shape, r.shape)
        # bf16 weight/activation streams -> looser tolerance vs the f32 reference.
        assert jnp.allclose(o, r, atol=3e-2, rtol=3e-2), float(jnp.max(jnp.abs(o - r)))

    print("KERNEL_OK")
</pallas_src>

<mosaic_0001>
module attributes {stable_mosaic.version = 11 : i64} {
  func.func @_mlp_kernel(%arg0: i32, %arg1: memref<8x64xbf16, #tpu.memory_space<vmem>>, %arg2: memref<64x32xbf16, #tpu.memory_space<vmem>>, %arg3: memref<1x32xf32, #tpu.memory_space<vmem>>, %arg4: memref<32x128xbf16, #tpu.memory_space<vmem>>, %arg5: memref<1x128xf32, #tpu.memory_space<vmem>>, %arg6: memref<128x9xbf16, #tpu.memory_space<vmem>>, %arg7: memref<1x9xf32, #tpu.memory_space<vmem>>, %arg8: memref<8x9xf32, #tpu.memory_space<vmem>>) attributes {dimension_semantics = [#tpu.dimension_semantics<parallel>], iteration_bounds = array<i64: 1>, scalar_prefetch = 0 : i64, scratch_operands = 0 : i64, tpu.core_type = #tpu.core_type<tc>, window_params = [{transform_indices = @transform_0, window_bounds = array<i64: 8, 64>}, {pipeline_mode = #tpu.pipeline_mode<synchronous>, transform_indices = @transform_1, window_bounds = array<i64: 64, 32>}, {pipeline_mode = #tpu.pipeline_mode<synchronous>, transform_indices = @transform_2, window_bounds = array<i64: 1, 32>}, {pipeline_mode = #tpu.pipeline_mode<synchronous>, transform_indices = @transform_3, window_bounds = array<i64: 32, 128>}, {pipeline_mode = #tpu.pipeline_mode<synchronous>, transform_indices = @transform_4, window_bounds = array<i64: 1, 128>}, {pipeline_mode = #tpu.pipeline_mode<synchronous>, transform_indices = @transform_5, window_bounds = array<i64: 128, 9>}, {pipeline_mode = #tpu.pipeline_mode<synchronous>, transform_indices = @transform_6, window_bounds = array<i64: 1, 9>}, {transform_indices = @transform_7, window_bounds = array<i64: 8, 9>}]} {
    %c0 = arith.constant 0 : index
    %c0_0 = arith.constant 0 : index
    %0 = vector.load %arg1[%c0, %c0_0] : memref<8x64xbf16, #tpu.memory_space<vmem>>, vector<8x64xbf16>
    %c0_1 = arith.constant 0 : index
    %c0_2 = arith.constant 0 : index
    %1 = vector.load %arg2[%c0_1, %c0_2] : memref<64x32xbf16, #tpu.memory_space<vmem>>, vector<64x32xbf16>
    %cst = arith.constant dense<0.000000e+00> : vector<8x32xf32>
    %2 = tpu.matmul %0, %1, %cst {dimension_numbers = #tpu.dot_dimension_numbers<[1], [0], [0], [1], [0, 0, 1, 1], [], []>} : vector<8x64xbf16>, vector<64x32xbf16>, vector<8x32xf32> -> vector<8x32xf32>
    %c0_3 = arith.constant 0 : index
    %c0_4 = arith.constant 0 : index
    %3 = vector.load %arg3[%c0_3, %c0_4] : memref<1x32xf32, #tpu.memory_space<vmem>>, vector<1x32xf32>
    %4 = vector.broadcast %3 : vector<1x32xf32> to vector<8x32xf32>
    %5 = arith.addf %2, %4 : vector<8x32xf32>
    %cst_5 = arith.constant 0.000000e+00 : f32
    %6 = vector.broadcast %cst_5 : f32 to vector<8x32xf32>
    %7 = arith.maximumf %5, %6 : vector<8x32xf32>
    %8 = arith.truncf %7 : vector<8x32xf32> to vector<8x32xbf16>
    %c0_6 = arith.constant 0 : index
    %c0_7 = arith.constant 0 : index
    %9 = vector.load %arg4[%c0_6, %c0_7] : memref<32x128xbf16, #tpu.memory_space<vmem>>, vector<32x128xbf16>
    %cst_8 = arith.constant dense<0.000000e+00> : vector<8x128xf32>
    %10 = tpu.matmul %8, %9, %cst_8 {dimension_numbers = #tpu.dot_dimension_numbers<[1], [0], [0], [1], [0, 0, 1, 1], [], []>} : vector<8x32xbf16>, vector<32x128xbf16>, vector<8x128xf32> -> vector<8x128xf32>
    %c0_9 = arith.constant 0 : index
    %c0_10 = arith.constant 0 : index
    %11 = vector.load %arg5[%c0_9, %c0_10] : memref<1x128xf32, #tpu.memory_space<vmem>>, vector<1x128xf32>
    %12 = vector.broadcast %11 : vector<1x128xf32> to vector<8x128xf32>
    %13 = arith.addf %10, %12 : vector<8x128xf32>
    %cst_11 = arith.constant 0.000000e+00 : f32
    %14 = vector.broadcast %cst_11 : f32 to vector<8x128xf32>
    %15 = arith.maximumf %13, %14 : vector<8x128xf32>
    %16 = arith.truncf %15 : vector<8x128xf32> to vector<8x128xbf16>
    %c0_12 = arith.constant 0 : index
    %c0_13 = arith.constant 0 : index
    %17 = vector.load %arg6[%c0_12, %c0_13] : memref<128x9xbf16, #tpu.memory_space<vmem>>, vector<128x9xbf16>
    %cst_14 = arith.constant dense<0.000000e+00> : vector<8x9xf32>
    %18 = tpu.matmul %16, %17, %cst_14 {dimension_numbers = #tpu.dot_dimension_numbers<[1], [0], [0], [1], [0, 0, 1, 1], [], []>} : vector<8x128xbf16>, vector<128x9xbf16>, vector<8x9xf32> -> vector<8x9xf32>
    %c0_15 = arith.constant 0 : index
    %c0_16 = arith.constant 0 : index
    %19 = vector.load %arg7[%c0_15, %c0_16] : memref<1x9xf32, #tpu.memory_space<vmem>>, vector<1x9xf32>
    %20 = vector.broadcast %19 : vector<1x9xf32> to vector<8x9xf32>
    %21 = arith.addf %18, %20 : vector<8x9xf32>
    %c0_17 = arith.constant 0 : index
    %c0_18 = arith.constant 0 : index
    %22 = vector.load %arg8[%c0_17, %c0_18] : memref<8x9xf32, #tpu.memory_space<vmem>>, vector<8x9xf32>
    tpu.vector_store %arg8[%c0_17, %c0_18], %21 {strides = array<i32>} : memref<8x9xf32, #tpu.memory_space<vmem>>, vector<8x9xf32>,
    return
  }
  func.func @transform_0(%arg0: i32) -> (i32, i32) {
    %c0_i32 = arith.constant 0 : i32
    %c0_i32_0 = arith.constant 0 : i32
    return %arg0, %c0_i32 : i32, i32
  }
  func.func @transform_1(%arg0: i32) -> (i32, i32) {
    %c0_i32 = arith.constant 0 : i32
    %c0_i32_0 = arith.constant 0 : i32
    %c0_i32_1 = arith.constant 0 : i32
    return %c0_i32, %c0_i32_0 : i32, i32
  }
  func.func @transform_2(%arg0: i32) -> (i32, i32) {
    %c0_i32 = arith.constant 0 : i32
    %c0_i32_0 = arith.constant 0 : i32
    %c0_i32_1 = arith.constant 0 : i32
    return %c0_i32, %c0_i32_0 : i32, i32
  }
  func.func @transform_3(%arg0: i32) -> (i32, i32) {
    %c0_i32 = arith.constant 0 : i32
    %c0_i32_0 = arith.constant 0 : i32
    %c0_i32_1 = arith.constant 0 : i32
    return %c0_i32, %c0_i32_0 : i32, i32
  }
  func.func @transform_4(%arg0: i32) -> (i32, i32) {
    %c0_i32 = arith.constant 0 : i32
    %c0_i32_0 = arith.constant 0 : i32
    %c0_i32_1 = arith.constant 0 : i32
    return %c0_i32, %c0_i32_0 : i32, i32
  }
  func.func @transform_5(%arg0: i32) -> (i32, i32) {
    %c0_i32 = arith.constant 0 : i32
    %c0_i32_0 = arith.constant 0 : i32
    %c0_i32_1 = arith.constant 0 : i32
    return %c0_i32, %c0_i32_0 : i32, i32
  }
  func.func @transform_6(%arg0: i32) -> (i32, i32) {
    %c0_i32 = arith.constant 0 : i32
    %c0_i32_0 = arith.constant 0 : i32
    %c0_i32_1 = arith.constant 0 : i32
    return %c0_i32, %c0_i32_0 : i32, i32
  }
  func.func @transform_7(%arg0: i32) -> (i32, i32) {
    %c0_i32 = arith.constant 0 : i32
    %c0_i32_0 = arith.constant 0 : i32
    return %arg0, %c0_i32 : i32, i32
  }
}

</mosaic_0001>

<llo_original>
// kernel: mlp_forward.1
$region0: #{mlp_forward.1}
  #allocation0 [shape = 'u32[]', space=smem, size = 0x4, offset = 0x4, fixed_abs, tag = 'smem constant byte address 0x4 - core index']
  #allocation1 [shape = 'u32[144,128]{1,0:T(1,128)}', space=vmem, size = 0x12000, scoped, tag = 'internal scratch']
  %s0 = inlined_call_operand.vmem [shape: bf16[8,64], index: 0, kind: input, shape index: {}]
  %s1 = inlined_call_operand.vmem [shape: bf16[64,32], index: 1, kind: input, shape index: {}]
  %s2 = inlined_call_operand.vmem [shape: f32[1,32], index: 2, kind: input, shape index: {}]
  %s3 = inlined_call_operand.vmem [shape: bf16[32,128], index: 3, kind: input, shape index: {}]
  %s4 = inlined_call_operand.vmem [shape: f32[1,128], index: 4, kind: input, shape index: {}]
  %s5 = inlined_call_operand.vmem [shape: bf16[128,9], index: 5, kind: input, shape index: {}]
  %s6 = inlined_call_operand.vmem [shape: f32[1,9], index: 6, kind: input, shape index: {}]
  %s7 = inlined_call_operand.vmem [shape: f32[8,9], index: 7, kind: output, shape index: {}]
  %s8 = sld [smem:[#allocation0]]
  $region38: #{mlp_forward.1} parent=0
    _
  %s10 = ssub.s32 1, %s8
  %s11 = scalar_select 0, %s10, %s8
  // Predicated region
  $region2: #{mlp_forward.1} parent=0 // pred_check
    _
  $region3: #{mlp_forward.1} parent=0 // pred_check_branch
    %13 = sbr.rel (0) target = $region5
  $region4: #{mlp_forward.1} parent=0 // pred_region
    _
  $region5: #{mlp_forward.1} parent=0 // pred_fallthru
    _
  // Predicated region
  $region6: #{mlp_forward.1} parent=0 // pred_check
    _
  $region7: #{mlp_forward.1} parent=0 // pred_check_branch
    %15 = sbr.rel (0) target = $region9
  $region8: #{mlp_forward.1} parent=0 // pred_region
    _
  $region9: #{mlp_forward.1} parent=0 // pred_fallthru
    _
  // Predicated region
  $region10: #{mlp_forward.1} parent=0 // pred_check
    _
  $region11: #{mlp_forward.1} parent=0 // pred_check_branch
    %17 = sbr.rel (0) target = $region13
  $region12: #{mlp_forward.1} parent=0 // pred_region
    _
  $region13: #{mlp_forward.1} parent=0 // pred_fallthru
    _
  // Predicated region
  $region14: #{mlp_forward.1} parent=0 // pred_check
    _
  $region15: #{mlp_forward.1} parent=0 // pred_check_branch
    %19 = sbr.rel (0) target = $region17
  $region16: #{mlp_forward.1} parent=0 // pred_region
    _
  $region17: #{mlp_forward.1} parent=0 // pred_fallthru
    _
  // Predicated region
  $region18: #{mlp_forward.1} parent=0 // pred_check
    _
  $region19: #{mlp_forward.1} parent=0 // pred_check_branch
    %21 = sbr.rel (0) target = $region21
  $region20: #{mlp_forward.1} parent=0 // pred_region
    _
  $region21: #{mlp_forward.1} parent=0 // pred_fallthru
    _
  // Predicated region
  $region22: #{mlp_forward.1} parent=0 // pred_check
    _
  $region23: #{mlp_forward.1} parent=0 // pred_check_branch
    %23 = sbr.rel (0) target = $region25
  $region24: #{mlp_forward.1} parent=0 // pred_region
    _
  $region25: #{mlp_forward.1} parent=0 // pred_fallthru
    _
  // Predicated region
  $region26: #{mlp_forward.1} parent=0 // pred_check
    _
  $region27: #{mlp_forward.1} parent=0 // pred_check_branch
    %25 = sbr.rel (0) target = $region29
  $region28: #{mlp_forward.1} parent=0 // pred_region
    _
  $region29: #{mlp_forward.1} parent=0 // pred_fallthru
    _
  %v27 = vld [vmem:[%s0] sm:$0xf]
  %v28 = vld [vmem:[%s1] sm:$0xf]
  %v29 = vld [vmem:[%s1 + $0x4] sm:$0xf]
  %v30 = vld [vmem:[%s1 + $0x8] sm:$0xf]
  %v31 = vld [vmem:[%s1 + $0xc] sm:$0xf]
  %v32 = vld [vmem:[%s1 + $0x10] sm:$0xf]
  %v33 = vld [vmem:[%s1 + $0x14] sm:$0xf]
  %v34 = vld [vmem:[%s1 + $0x18] sm:$0xf]
  %v35 = vld [vmem:[%s1 + $0x1c] sm:$0xf]
  %v36 = vld [vmem:[%s2] sm:$0x1]
  %v38 = vlaneseq
  %v39 = vshrl.u32 %v38, 7
  %v40 = vsub.s32 0, %v39
  %v41 = vrot.slane %v36, %v40
  %v51 = vunpack.c.l.b16 %v28
  %v52 = vunpack.c.l.b16 %v29
  %v53 = vunpack.c.l.b16 %v30
  %v54 = vunpack.c.l.b16 %v31
  %v55 = vunpack.c.l.b16 %v32
  %v56 = vunpack.c.l.b16 %v33
  %v57 = vunpack.c.l.b16 %v34
  %v58 = vunpack.c.l.b16 %v35
  %v59 = vpack.c.b16 %v52, %v51
  %v60 = vpack.c.b16 %v54, %v53
  %v61 = vpack.c.b16 %v56, %v55
  %v62 = vpack.c.b16 %v58, %v57
  %vm67 = vcmask 523264
  %v69 = vsel %vm67, %v27, 0
  %71 = vmatprep.subr.bf16.mxu0 0
  %72 = vmatpush1.bf16.msra.mxu0 %v59
  %73 = vmatprep.subr.bf16.mxu0 0
  %74 = vmatpush1.bf16.msra.mxu0 %v60
  %75 = vmatprep.subr.bf16.mxu0 0
  %76 = vmatpush1.bf16.msra.mxu0 %v61
  %77 = vmatprep.subr.bf16.mxu0 0
  %78 = vmatpush1.bf16.msra.mxu0 %v62
  %79 = vmatprep.subr.bf16.mxu0 0
  %80 = vmatpush1.bf16.msra.mxu0 0
  %81 = vmatprep.subr.bf16.mxu0 0
  %82 = vmatpush1.bf16.msra.mxu0 0
  %83 = vmatprep.subr.bf16.mxu0 0
  %84 = vmatpush1.bf16.msra.mxu0 0
  %85 = vmatprep.subr.bf16.mxu0 0
  %86 = vmatpush1.bf16.msra.mxu0 0
  %87 = vmatprep.subr.bf16.mxu0 0
  %88 = vmatpush1.bf16.msra.mxu0 0
  %89 = vmatprep.subr.bf16.mxu0 0
  %90 = vmatpush1.bf16.msra.mxu0 0
  %91 = vmatprep.subr.bf16.mxu0 0
  %92 = vmatpush1.bf16.msra.mxu0 0
  %93 = vmatprep.subr.bf16.mxu0 0
  %94 = vmatpush1.bf16.msra.mxu0 0
  %95 = vmatprep.subr.bf16.mxu0 0
  %96 = vmatpush1.bf16.msra.mxu0 0
  %97 = vmatprep.subr.bf16.mxu0 0
  %98 = vmatpush1.bf16.msra.mxu0 0
  %99 = vmatprep.subr.bf16.mxu0 0
  %100 = vmatpush1.bf16.msra.mxu0 0
  %101 = vmatprep.subr.bf16.mxu0 0
  %102 = vmatpush1.bf16.msra.mxu0 0
  %103 = vmatprep.mubr.bf16.mxu0 0
  %104 = vmatmul.mubr.bf16.gmra.mrb[0].mxu0 %v69
  %v105 = vpop.f32.mrb[0].mxu0
  %v106 = vadd.f32 %v41, %v105
  %v107 = vpop.f32.mrb[0].mxu0
  %v108 = vpop.f32.mrb[0].mxu0
  %v109 = vpop.f32.mrb[0].mxu0
  %110 = vdwg.mxu0
  %v111 = vmax.f32 %v106, 0.0
  %v112 = vpack.c.bf16 %v111, %v111
  %v113 = vld [vmem:[%s3] sm:$0xf]
  %v114 = vld [vmem:[%s3 + $0x4] sm:$0xf]
  %v115 = vld [vmem:[%s3 + $0x8] sm:$0xf]
  %v116 = vld [vmem:[%s3 + $0xc] sm:$0xf]
  %v117 = vld [vmem:[%s4] sm:$0x1]
  %v119 = vlaneseq
  %v120 = vshrl.u32 %v119, 7
  %v121 = vsub.s32 0, %v120
  %v122 = vrot.slane %v117, %v121
  %v128 = vunpack.c.l.b16 %v113
  %v129 = vunpack.c.l.b16 %v114
  %v130 = vunpack.c.l.b16 %v115
  %v131 = vunpack.c.l.b16 %v116
  %v132 = vpack.c.b16 %v129, %v128
  %v133 = vpack.c.b16 %v131, %v130
  %vm136 = vcmask 261120
  %v138 = vsel %vm136, %v112, 0
  %140 = vmatprep.subr.bf16.mxu0 0
  %141 = vmatpush1.bf16.msra.mxu0 %v132
  %142 = vmatprep.subr.bf16.mxu0 0
  %143 = vmatpush1.bf16.msra.mxu0 %v133
  %144 = vmatprep.subr.bf16.mxu0 0
  %145 = vmatpush1.bf16.msra.mxu0 0
  %146 = vmatprep.subr.bf16.mxu0 0
  %147 = vmatpush1.bf16.msra.mxu0 0
  %148 = vmatprep.subr.bf16.mxu0 0
  %149 = vmatpush1.bf16.msra.mxu0 0
  %150 = vmatprep.subr.bf16.mxu0 0
  %151 = vmatpush1.bf16.msra.mxu0 0
  %152 = vmatprep.subr.bf16.mxu0 0
  %153 = vmatpush1.bf16.msra.mxu0 0
  %154 = vmatprep.subr.bf16.mxu0 0
  %155 = vmatpush1.bf16.msra.mxu0 0
  %156 = vmatprep.subr.bf16.mxu0 0
  %157 = vmatpush1.bf16.msra.mxu0 0
  %158 = vmatprep.subr.bf16.mxu0 0
  %159 = vmatpush1.bf16.msra.mxu0 0
  %160 = vmatprep.subr.bf16.mxu0 0
  %161 = vmatpush1.bf16.msra.mxu0 0
  %162 = vmatprep.subr.bf16.mxu0 0
  %163 = vmatpush1.bf16.msra.mxu0 0
  %164 = vmatprep.subr.bf16.mxu0 0
  %165 = vmatpush1.bf16.msra.mxu0 0
  %166 = vmatprep.subr.bf16.mxu0 0
  %167 = vmatpush1.bf16.msra.mxu0 0
  %168 = vmatprep.subr.bf16.mxu0 0
  %169 = vmatpush1.bf16.msra.mxu0 0
  %170 = vmatprep.subr.bf16.mxu0 0
  %171 = vmatpush1.bf16.msra.mxu0 0
  %172 = vmatprep.mubr.bf16.mxu0 0
  %173 = vmatmul.mubr.bf16.gmra.mrb[0].mxu0 %v138
  %v174 = vpop.f32.mrb[0].mxu0
  %v175 = vadd.f32 %v122, %v174
  %v176 = vpop.f32.mrb[0].mxu0
  %v177 = vpop.f32.mrb[0].mxu0
  %v178 = vpop.f32.mrb[0].mxu0
  %179 = vdwg.mxu0
  %v180 = vmax.f32 %v175, 0.0
  %v181 = vpack.c.bf16 %v180, %v180
  %v182 = vld [vmem:[%s5] sm:$0xf]
  %v183 = vld [vmem:[%s5 + $0x4] sm:$0xf]
  %v184 = vld [vmem:[%s5 + $0x8] sm:$0xf]
  %v185 = vld [vmem:[%s5 + $0xc] sm:$0xf]
  %v186 = vld [vmem:[%s5 + $0x10] sm:$0xf]
  %v187 = vld [vmem:[%s5 + $0x14] sm:$0xf]
  %v188 = vld [vmem:[%s5 + $0x18] sm:$0xf]
  %v189 = vld [vmem:[%s5 + $0x1c] sm:$0xf]
  %v190 = vld [vmem:[%s5 + $0x20] sm:$0xf]
  %v191 = vld [vmem:[%s5 + $0x24] sm:$0xf]
  %v192 = vld [vmem:[%s5 + $0x28] sm:$0xf]
  %v193 = vld [vmem:[%s5 + $0x2c] sm:$0xf]
  %v194 = vld [vmem:[%s5 + $0x30] sm:$0xf]
  %v195 = vld [vmem:[%s5 + $0x34] sm:$0xf]
  %v196 = vld [vmem:[%s5 + $0x38] sm:$0xf]
  %v197 = vld [vmem:[%s5 + $0x3c] sm:$0xf]
  %v198 = vld [vmem:[%s6] sm:$0x1]
  %v200 = vlaneseq
  %v201 = vshrl.u32 %v200, 7
  %v202 = vsub.s32 0, %v201
  %v203 = vrot.slane %v198, %v202
  %v221 = vunpack.c.l.b16 %v182
  %v222 = vunpack.c.l.b16 %v183
  %v223 = vunpack.c.l.b16 %v184
  %v224 = vunpack.c.l.b16 %v185
  %v225 = vunpack.c.l.b16 %v186
  %v226 = vunpack.c.l.b16 %v187
  %v227 = vunpack.c.l.b16 %v188
  %v228 = vunpack.c.l.b16 %v189
  %v229 = vunpack.c.l.b16 %v190
  %v230 = vunpack.c.l.b16 %v191
  %v231 = vunpack.c.l.b16 %v192
  %v232 = vunpack.c.l.b16 %v193
  %v233 = vunpack.c.l.b16 %v194
  %v234 = vunpack.c.l.b16 %v195
  %v235 = vunpack.c.l.b16 %v196
  %v236 = vunpack.c.l.b16 %v197
  %v237 = vpack.c.b16 %v222, %v221
  %v238 = vpack.c.b16 %v224, %v223
  %v239 = vpack.c.b16 %v226, %v225
  %v240 = vpack.c.b16 %v228, %v227
  %v241 = vpack.c.b16 %v230, %v229
  %v242 = vpack.c.b16 %v232, %v231
  %v243 = vpack.c.b16 %v234, %v233
  %v244 = vpack.c.b16 %v236, %v235
  %253 = vmatprep.subr.bf16.mxu0 0
  %254 = vmatpush1.bf16.msra.mxu0 %v237
  %255 = vmatprep.subr.bf16.mxu0 0
  %256 = vmatpush1.bf16.msra.mxu0 %v238
  %257 = vmatprep.subr.bf16.mxu0 0
  %258 = vmatpush1.bf16.msra.mxu0 %v239
  %259 = vmatprep.subr.bf16.mxu0 0
  %260 = vmatpush1.bf16.msra.mxu0 %v240
  %261 = vmatprep.subr.bf16.mxu0 0
  %262 = vmatpush1.bf16.msra.mxu0 %v241
  %263 = vmatprep.subr.bf16.mxu0 0
  %264 = vmatpush1.bf16.msra.mxu0 %v242
  %265 = vmatprep.subr.bf16.mxu0 0
  %266 = vmatpush1.bf16.msra.mxu0 %v243
  %267 = vmatprep.subr.bf16.mxu0 0
  %268 = vmatpush1.bf16.msra.mxu0 %v244
  %269 = vmatprep.subr.bf16.mxu0 0
  %270 = vmatpush1.bf16.msra.mxu0 0
  %271 = vmatprep.subr.bf16.mxu0 0
  %272 = vmatpush1.bf16.msra.mxu0 0
  %273 = vmatprep.subr.bf16.mxu0 0
  %274 = vmatpush1.bf16.msra.mxu0 0
  %275 = vmatprep.subr.bf16.mxu0 0
  %276 = vmatpush1.bf16.msra.mxu0 0
  %277 = vmatprep.subr.bf16.mxu0 0
  %278 = vmatpush1.bf16.msra.mxu0 0
  %279 = vmatprep.subr.bf16.mxu0 0
  %280 = vmatpush1.bf16.msra.mxu0 0
  %281 = vmatprep.subr.bf16.mxu0 0
  %282 = vmatpush1.bf16.msra.mxu0 0
  %283 = vmatprep.subr.bf16.mxu0 0
  %284 = vmatpush1.bf16.msra.mxu0 0
  %285 = vmatprep.mubr.bf16.mxu0 0
  %286 = vmatmul.mubr.bf16.gmra.mrb[0].mxu0 %v181
  %v287 = vpop.f32.mrb[0].mxu0
  %v288 = vadd.f32 %v203, %v287
  %v289 = vpop.f32.mrb[0].mxu0
  %v290 = vpop.f32.mrb[0].mxu0
  %v291 = vpop.f32.mrb[0].mxu0
  %292 = vdwg.mxu0
  %vm293 = vcmask 72704
  %294 = vst.msk [vmem:[%s7] sm:$0xff] %vm293, %v288
  // Predicated region
  $region30: #{mlp_forward.1} parent=0 // pred_check
    _
  $region31: #{mlp_forward.1} parent=0 // pred_check_branch
    %296 = sbr.rel (0) target = $region33
  $region32: #{mlp_forward.1} parent=0 // pred_region
    _
  $region33: #{mlp_forward.1} parent=0 // pred_fallthru
    _
  // Predicated region
  $region34: #{mlp_forward.1} parent=0 // pred_check
    _
  $region35: #{mlp_forward.1} parent=0 // pred_check_branch
    %298 = sbr.rel (0) target = $region37
  $region36: #{mlp_forward.1} parent=0 // pred_region
    _
  $region37: #{mlp_forward.1} parent=0 // pred_fallthru
    _

</llo_original>
